<compile_context>
chip_gen: v5e
topology: v5e:2x2
jax: 0.10.0
libtpu: 0.0.40
codegen_flags: <defaults>
</compile_context>

<pallas_src>
import functools

import jax
import jax.numpy as jnp
from jax.experimental import pallas as pl
from jax.experimental.pallas import tpu as pltpu


def _round_up(v, m):
    return ((v + m - 1) // m) * m


def mlp_kernel(x_ref, w1_ref, b1_ref, w2_ref, b2_ref, out_ref):
    """One batch tile of softmax(sigmoid(x @ W1 + b1) @ W2 + b2, axis=-1)."""
    x = x_ref[...]                                             # (TB, F) f32

    # Layer 1 on the MXU (K is tiny, but the MXU is otherwise idle and this
    # keeps the VPU/XLU free of broadcast FMAs).
    h = jnp.dot(x, w1_ref[...], preferred_element_type=jnp.float32)
    h = h + b1_ref[...]
    h = jax.nn.sigmoid(h)                                      # EUP exp/recip

    # Layer 2 on the MXU.
    logits = jnp.dot(h, w2_ref[...], preferred_element_type=jnp.float32)
    logits = logits + b2_ref[...]                              # (TB, O)

    # Numerically stable softmax over the last axis (== dim=1 of the module).
    m = jnp.max(logits, axis=-1, keepdims=True)
    e = jnp.exp(logits - m)
    denom = jnp.sum(e, axis=-1, keepdims=True)
    # Exact division (approx reciprocal previously broke the sum-to-1 check).
    out_ref[...] = (e / denom).astype(out_ref.dtype)


@functools.partial(jax.jit, static_argnames=("max_block_b",))
def mlp_forward(x, w1, b1, w2, b2, *, max_block_b=2048):
    """x: (B, in), w1: (in, mid), b1: (mid,)|(1, mid), w2: (mid, out), b2 likewise."""
    B, F = x.shape
    M = w1.shape[1]
    O = w2.shape[1]

    # Biases as (1, N) rows (static shape check; no-op when already 2-D).
    if b1.ndim != 2:
        b1 = b1.reshape(1, M)
    if b2.ndim != 2:
        b2 = b2.reshape(1, O)

    # Batch tile: aim for ~2 grid steps so the "parallel" batch axis shards
    # across both TensorCores on v7x, while keeping per-step overhead
    # negligible on single-TC v5e/v6e.  Cap so the tile working set stays
    # comfortably inside VMEM on all generations.
    if B <= 8:
        tb = B
    else:
        tb = min(max_block_b, _round_up(pl.cdiv(B, 2), 8))
    grid = (pl.cdiv(B, tb),)
    vmem = pltpu.MemorySpace.VMEM

    return pl.pallas_call(
        mlp_kernel,
        out_shape=jax.ShapeDtypeStruct((B, O), jnp.float32),
        grid_spec=pltpu.PrefetchScalarGridSpec(
            num_scalar_prefetch=0,
            grid=grid,
            in_specs=[
                # Batch-tiled activations.
                pl.BlockSpec((tb, F), lambda i: (i, 0), memory_space=vmem),
                # Weights / biases stay VMEM-resident across grid steps.
                pl.BlockSpec((F, M), lambda i: (0, 0), memory_space=vmem),
                pl.BlockSpec((1, M), lambda i: (0, 0), memory_space=vmem),
                pl.BlockSpec((M, O), lambda i: (0, 0), memory_space=vmem),
                pl.BlockSpec((1, O), lambda i: (0, 0), memory_space=vmem),
            ],
            out_specs=pl.BlockSpec((tb, O), lambda i: (i, 0),
                                   memory_space=vmem),
        ),
        compiler_params=pltpu.CompilerParams(
            dimension_semantics=("parallel",),
            vmem_limit_bytes=32 * 1024 * 1024,
        ),
    )(x, w1, b1, w2, b2)


if __name__ == "__main__":
    # Iris-like shapes: 4 input features, small hidden layer, 8 classes.
    batch = 256
    input_size = 4
    middle_size = 32
    output_size = 8

    key = jax.random.PRNGKey(0)
    kx, k1, k2, k3, k4 = jax.random.split(key, 5)

    x = jax.random.normal(kx, (batch, input_size), dtype=jnp.float32)

    # PyTorch-Linear-style uniform init bounds (weights stored as (in, out)).
    bound1 = 1.0 / jnp.sqrt(jnp.float32(input_size))
    w1 = jax.random.uniform(k1, (input_size, middle_size), jnp.float32,
                            -bound1, bound1)
    b1 = jax.random.uniform(k2, (1, middle_size), jnp.float32, -bound1, bound1)

    bound2 = 1.0 / jnp.sqrt(jnp.float32(middle_size))
    w2 = jax.random.uniform(k3, (middle_size, output_size), jnp.float32,
                            -bound2, bound2)
    b2 = jax.random.uniform(k4, (1, output_size), jnp.float32, -bound2, bound2)

    out = mlp_forward(x, w1, b1, w2, b2)
    out = jax.block_until_ready(out)

    # Pure-JAX reference check.
    ref = jax.nn.softmax(jax.nn.sigmoid(x @ w1 + b1) @ w2 + b2, axis=1)
    assert out.shape == (batch, output_size)
    assert jnp.allclose(out, ref, atol=1e-3, rtol=1e-3), "mismatch vs reference"
    assert jnp.allclose(jnp.sum(out, axis=1), 1.0, atol=1e-3), \
        "softmax rows must sum to 1"

    print("KERNEL_OK")
</pallas_src>

<mosaic_0001>
module attributes {stable_mosaic.version = 11 : i64} {
  func.func @mlp_kernel(%arg0: i32, %arg1: memref<128x4xf32, #tpu.memory_space<vmem>>, %arg2: memref<4x32xf32, #tpu.memory_space<vmem>>, %arg3: memref<1x32xf32, #tpu.memory_space<vmem>>, %arg4: memref<32x8xf32, #tpu.memory_space<vmem>>, %arg5: memref<1x8xf32, #tpu.memory_space<vmem>>, %arg6: memref<128x8xf32, #tpu.memory_space<vmem>>) attributes {dimension_semantics = [#tpu.dimension_semantics<parallel>], iteration_bounds = array<i64: 2>, scalar_prefetch = 0 : i64, scratch_operands = 0 : i64, tpu.core_type = #tpu.core_type<tc>, window_params = [{transform_indices = @transform_0, window_bounds = array<i64: 128, 4>}, {pipeline_mode = #tpu.pipeline_mode<synchronous>, transform_indices = @transform_1, window_bounds = array<i64: 4, 32>}, {pipeline_mode = #tpu.pipeline_mode<synchronous>, transform_indices = @transform_2, window_bounds = array<i64: 1, 32>}, {pipeline_mode = #tpu.pipeline_mode<synchronous>, transform_indices = @transform_3, window_bounds = array<i64: 32, 8>}, {pipeline_mode = #tpu.pipeline_mode<synchronous>, transform_indices = @transform_4, window_bounds = array<i64: 1, 8>}, {transform_indices = @transform_5, window_bounds = array<i64: 128, 8>}]} {
    %c0 = arith.constant 0 : index
    %c0_0 = arith.constant 0 : index
    %0 = vector.load %arg1[%c0, %c0_0] : memref<128x4xf32, #tpu.memory_space<vmem>>, vector<128x4xf32>
    %c0_1 = arith.constant 0 : index
    %c0_2 = arith.constant 0 : index
    %1 = vector.load %arg2[%c0_1, %c0_2] : memref<4x32xf32, #tpu.memory_space<vmem>>, vector<4x32xf32>
    %cst = arith.constant dense<0.000000e+00> : vector<128x32xf32>
    %2 = tpu.matmul %0, %1, %cst {dimension_numbers = #tpu.dot_dimension_numbers<[1], [0], [0], [1], [0, 0, 1, 1], [], []>} : vector<128x4xf32>, vector<4x32xf32>, vector<128x32xf32> -> vector<128x32xf32>
    %c0_3 = arith.constant 0 : index
    %c0_4 = arith.constant 0 : index
    %3 = vector.load %arg3[%c0_3, %c0_4] : memref<1x32xf32, #tpu.memory_space<vmem>>, vector<1x32xf32>
    %4 = vector.broadcast %3 : vector<1x32xf32> to vector<128x32xf32>
    %5 = arith.addf %2, %4 : vector<128x32xf32>
    %6 = arith.negf %5 : vector<128x32xf32>
    %7 = math.exp %6 : vector<128x32xf32>
    %cst_5 = arith.constant 1.000000e+00 : f32
    %8 = vector.broadcast %cst_5 : f32 to vector<128x32xf32>
    %9 = arith.addf %8, %7 : vector<128x32xf32>
    %10 = arith.divf %8, %9 : vector<128x32xf32>
    %c0_6 = arith.constant 0 : index
    %c0_7 = arith.constant 0 : index
    %11 = vector.load %arg4[%c0_6, %c0_7] : memref<32x8xf32, #tpu.memory_space<vmem>>, vector<32x8xf32>
    %cst_8 = arith.constant dense<0.000000e+00> : vector<128x8xf32>
    %12 = tpu.matmul %10, %11, %cst_8 {dimension_numbers = #tpu.dot_dimension_numbers<[1], [0], [0], [1], [0, 0, 1, 1], [], []>} : vector<128x32xf32>, vector<32x8xf32>, vector<128x8xf32> -> vector<128x8xf32>
    %c0_9 = arith.constant 0 : index
    %c0_10 = arith.constant 0 : index
    %13 = vector.load %arg5[%c0_9, %c0_10] : memref<1x8xf32, #tpu.memory_space<vmem>>, vector<1x8xf32>
    %14 = vector.broadcast %13 : vector<1x8xf32> to vector<128x8xf32>
    %15 = arith.addf %12, %14 : vector<128x8xf32>
    %cst_11 = arith.constant dense<0xFF800000> : vector<128xf32>
    %16 = vector.multi_reduction <maximumf>, %15, %cst_11 [1] : vector<128x8xf32> to vector<128xf32>
    %17 = vector.shape_cast %16 : vector<128xf32> to vector<128x1xf32>
    %18 = vector.broadcast %17 : vector<128x1xf32> to vector<128x8xf32>
    %19 = arith.subf %15, %18 : vector<128x8xf32>
    %20 = math.exp %19 : vector<128x8xf32>
    %cst_12 = arith.constant dense<0.000000e+00> : vector<128xf32>
    %21 = vector.multi_reduction <add>, %20, %cst_12 [1] : vector<128x8xf32> to vector<128xf32>
    %22 = vector.shape_cast %21 : vector<128xf32> to vector<128x1xf32>
    %23 = vector.broadcast %22 : vector<128x1xf32> to vector<128x8xf32>
    %24 = arith.divf %20, %23 : vector<128x8xf32>
    %c0_13 = arith.constant 0 : index
    %c0_14 = arith.constant 0 : index
    %25 = vector.load %arg6[%c0_13, %c0_14] : memref<128x8xf32, #tpu.memory_space<vmem>>, vector<128x8xf32>
    tpu.vector_store %arg6[%c0_13, %c0_14], %24 {strides = array<i32>} : memref<128x8xf32, #tpu.memory_space<vmem>>, vector<128x8xf32>,
    return
  }
  func.func @transform_0(%arg0: i32) -> (i32, i32) {
    %c0_i32 = arith.constant 0 : i32
    %c0_i32_0 = arith.constant 0 : i32
    return %arg0, %c0_i32 : i32, i32
  }
  func.func @transform_1(%arg0: i32) -> (i32, i32) {
    %c0_i32 = arith.constant 0 : i32
    %c0_i32_0 = arith.constant 0 : i32
    %c0_i32_1 = arith.constant 0 : i32
    return %c0_i32, %c0_i32_0 : i32, i32
  }
  func.func @transform_2(%arg0: i32) -> (i32, i32) {
    %c0_i32 = arith.constant 0 : i32
    %c0_i32_0 = arith.constant 0 : i32
    %c0_i32_1 = arith.constant 0 : i32
    return %c0_i32, %c0_i32_0 : i32, i32
  }
  func.func @transform_3(%arg0: i32) -> (i32, i32) {
    %c0_i32 = arith.constant 0 : i32
    %c0_i32_0 = arith.constant 0 : i32
    %c0_i32_1 = arith.constant 0 : i32
    return %c0_i32, %c0_i32_0 : i32, i32
  }
  func.func @transform_4(%arg0: i32) -> (i32, i32) {
    %c0_i32 = arith.constant 0 : i32
    %c0_i32_0 = arith.constant 0 : i32
    %c0_i32_1 = arith.constant 0 : i32
    return %c0_i32, %c0_i32_0 : i32, i32
  }
  func.func @transform_5(%arg0: i32) -> (i32, i32) {
    %c0_i32 = arith.constant 0 : i32
    %c0_i32_0 = arith.constant 0 : i32
    return %arg0, %c0_i32 : i32, i32
  }
}

</mosaic_0001>

<llo_original>
// kernel: mlp_forward.1
$region0: #{mlp_forward.1}
  #allocation0 [shape = 'u32[]', space=smem, size = 0x4, offset = 0x4, fixed_abs, tag = 'smem constant byte address 0x4 - core index']
  #allocation1 [shape = 'u32[72,128]{1,0:T(1,128)}', space=vmem, size = 0x9000, scoped, tag = 'internal scratch']
  %s0 = inlined_call_operand.vmem [shape: f32[256,4], index: 0, kind: input, shape index: {}]
  %s1 = inlined_call_operand.vmem [shape: f32[4,32], index: 1, kind: input, shape index: {}]
  %s2 = inlined_call_operand.vmem [shape: f32[1,32], index: 2, kind: input, shape index: {}]
  %s3 = inlined_call_operand.vmem [shape: f32[32,8], index: 3, kind: input, shape index: {}]
  %s4 = inlined_call_operand.vmem [shape: f32[1,8], index: 4, kind: input, shape index: {}]
  %s5 = inlined_call_operand.vmem [shape: f32[256,8], index: 5, kind: output, shape index: {}]
  %s6 = sld [smem:[#allocation0]]
  $region53: #{mlp_forward.1} parent=0
    _
  %s8 = ssub.s32 1, %s6
  %s9 = scalar_select 0, %s8, %s6
  loop: start=0, step=1, limit=4
  $region2: #{mlp_forward.1} parent=0 // loop_pre_header
    _
  $region3: #{mlp_forward.1} parent=0 // loop_header
    %s11 = sphi 0, %s15
    %p12 = scmp.ge.s32.totalorder %s11, 4
    %s21 = sphi 0, %s23
    %s24 = sphi 0, %s21
    %s25 = sphi 0, %s24
    %s41 = sphi 0, %s25
    %s45 = sphi 0, %s45
    %s47 = sphi 0, %s45
    %s48 = sphi 0, %s47
    %s62 = sphi 0, %s48
    %s66 = sphi 0, %s66
    %s68 = sphi 0, %s66
    %s69 = sphi 0, %s68
    %s83 = sphi 0, %s69
    %s87 = sphi 0, %s87
    %s89 = sphi 0, %s87
    %s90 = sphi 0, %s89
    %s104 = sphi 0, %s90
    %s108 = sphi 0, %s108
    %s110 = sphi 0, %s108
    %s111 = sphi 0, %s110
    %s125 = sphi 0, %s111
    %s131 = sphi 0, %s133
    %s134 = sphi 0, %s131
    %s135 = sphi 0, %s134
    %s151 = sphi 0, %s135
  $region4: #{mlp_forward.1} parent=0 // loop_header_branch
    %14 = sbr.rel (%p12) target = $region8
  $region5: #{mlp_forward.1} parent=0 // loop_body
    %s16 = ssub.s32 %s11, 1
    %s17 = ssub.s32 %s11, 2
    %s18 = sadd.s32 %s11, 1
    %s19 = ssub.s32 %s11, %s18
    %p20 = scmp.eq.s32.totalorder %s19, 0
    %s22 = sadd.s32 %s21, 1
    %s23 = scalar_select %p20, %s21, %s22
    %p26 = pneg %p20
    %p27 = scmp.eq.s32.totalorder %s11, 1
    %p28 = por %p26, %p27
    %p29 = scmp.ne.s32.totalorder %s21, %s24
    %p30 = scmp.eq.s32.totalorder %s11, 0
    %p31 = por %p29, %p30
    %p32 = scmp.ne.s32.totalorder %s21, %s24
    %p33 = scmp.eq.s32.totalorder %s16, 1
    %p34 = por %p32, %p33
    %p35 = scmp.ne.s32.totalorder %s24, %s25
    %p36 = scmp.eq.s32.totalorder %s16, 0
    %p37 = por %p35, %p36
    %p38 = scmp.ne.s32.totalorder %s24, %s25
    %p39 = scmp.eq.s32.totalorder %s17, 1
    %p40 = por %p38, %p39
    %p42 = scmp.ne.s32.totalorder %s25, %s41
    %p43 = scmp.eq.s32.totalorder %s17, 0
    %p44 = por %p42, %p43
    %s46 = sadd.s32 %s45, 1
    %p49 = scmp.eq.s32.totalorder %s11, 1
    %p50 = scmp.ne.s32.totalorder %s45, %s47
    %p51 = scmp.eq.s32.totalorder %s11, 0
    %p52 = por %p50, %p51
    %p53 = scmp.ne.s32.totalorder %s45, %s47
    %p54 = scmp.eq.s32.totalorder %s16, 1
    %p55 = por %p53, %p54
    %p56 = scmp.ne.s32.totalorder %s47, %s48
    %p57 = scmp.eq.s32.totalorder %s16, 0
    %p58 = por %p56, %p57
    %p59 = scmp.ne.s32.totalorder %s47, %s48
    %p60 = scmp.eq.s32.totalorder %s17, 1
    %p61 = por %p59, %p60
    %p63 = scmp.ne.s32.totalorder %s48, %s62
    %p64 = scmp.eq.s32.totalorder %s17, 0
    %p65 = por %p63, %p64
    %s67 = sadd.s32 %s66, 1
    %p70 = scmp.eq.s32.totalorder %s11, 1
    %p71 = scmp.ne.s32.totalorder %s66, %s68
    %p72 = scmp.eq.s32.totalorder %s11, 0
    %p73 = por %p71, %p72
    %p74 = scmp.ne.s32.totalorder %s66, %s68
    %p75 = scmp.eq.s32.totalorder %s16, 1
    %p76 = por %p74, %p75
    %p77 = scmp.ne.s32.totalorder %s68, %s69
    %p78 = scmp.eq.s32.totalorder %s16, 0
    %p79 = por %p77, %p78
    %p80 = scmp.ne.s32.totalorder %s68, %s69
    %p81 = scmp.eq.s32.totalorder %s17, 1
    %p82 = por %p80, %p81
    %p84 = scmp.ne.s32.totalorder %s69, %s83
    %p85 = scmp.eq.s32.totalorder %s17, 0
    %p86 = por %p84, %p85
    %s88 = sadd.s32 %s87, 1
    %p91 = scmp.eq.s32.totalorder %s11, 1
    %p92 = scmp.ne.s32.totalorder %s87, %s89
    %p93 = scmp.eq.s32.totalorder %s11, 0
    %p94 = por %p92, %p93
    %p95 = scmp.ne.s32.totalorder %s87, %s89
    %p96 = scmp.eq.s32.totalorder %s16, 1
    %p97 = por %p95, %p96
    %p98 = scmp.ne.s32.totalorder %s89, %s90
    %p99 = scmp.eq.s32.totalorder %s16, 0
    %p100 = por %p98, %p99
    %p101 = scmp.ne.s32.totalorder %s89, %s90
    %p102 = scmp.eq.s32.totalorder %s17, 1
    %p103 = por %p101, %p102
    %p105 = scmp.ne.s32.totalorder %s90, %s104
    %p106 = scmp.eq.s32.totalorder %s17, 0
    %p107 = por %p105, %p106
    %s109 = sadd.s32 %s108, 1
    %p112 = scmp.eq.s32.totalorder %s11, 1
    %p113 = scmp.ne.s32.totalorder %s108, %s110
    %p114 = scmp.eq.s32.totalorder %s11, 0
    %p115 = por %p113, %p114
    %p116 = scmp.ne.s32.totalorder %s108, %s110
    %p117 = scmp.eq.s32.totalorder %s16, 1
    %p118 = por %p116, %p117
    %p119 = scmp.ne.s32.totalorder %s110, %s111
    %p120 = scmp.eq.s32.totalorder %s16, 0
    %p121 = por %p119, %p120
    %p122 = scmp.ne.s32.totalorder %s110, %s111
    %p123 = scmp.eq.s32.totalorder %s17, 1
    %p124 = por %p122, %p123
    %p126 = scmp.ne.s32.totalorder %s111, %s125
    %p127 = scmp.eq.s32.totalorder %s17, 0
    %p128 = por %p126, %p127
    %s129 = ssub.s32 %s11, %s18
    %p130 = scmp.eq.s32.totalorder %s129, 0
    %s132 = sadd.s32 %s131, 1
    %s133 = scalar_select %p130, %s131, %s132
    %p136 = pneg %p130
    %p137 = scmp.eq.s32.totalorder %s11, 1
    %p138 = por %p136, %p137
    %p139 = scmp.ne.s32.totalorder %s131, %s134
    %p140 = scmp.eq.s32.totalorder %s11, 0
    %p141 = por %p139, %p140
    %p142 = scmp.ne.s32.totalorder %s131, %s134
    %p143 = scmp.eq.s32.totalorder %s16, 1
    %p144 = por %p142, %p143
    %p145 = scmp.ne.s32.totalorder %s134, %s135
    %p146 = scmp.eq.s32.totalorder %s16, 0
    %p147 = por %p145, %p146
    %p148 = scmp.ne.s32.totalorder %s134, %s135
    %p149 = scmp.eq.s32.totalorder %s17, 1
    %p150 = por %p148, %p149
    %p152 = scmp.ne.s32.totalorder %s135, %s151
    %p153 = scmp.eq.s32.totalorder %s17, 0
    %p154 = por %p152, %p153
    %p155 = scmp.le.s32.totalorder 1, %s11
    %p156 = scmp.lt.s32.totalorder %s11, 3
    %p157 = pnand %p155, %p156
    %p158 = pneg %p157
    // Predicated region
    $region9: #{mlp_forward.1} parent=5 // pred_check
      _
    $region10: #{mlp_forward.1} parent=5 // pred_check_branch
      %160 = sbr.rel (%p157) target = $region12
    $region11: #{mlp_forward.1} parent=5 // pred_region
      %s161 = ssub.s32 %s11, 1
      // Predicated region
      $region13: #{mlp_forward.1} parent=11 // pred_check
        %p162 = pneg %p58
      $region14: #{mlp_forward.1} parent=11 // pred_check_branch
        %164 = sbr.rel (%p162) target = $region16
      $region15: #{mlp_forward.1} parent=11 // pred_region
        _
      $region16: #{mlp_forward.1} parent=11 // pred_fallthru
        _
      // Predicated region
      $region17: #{mlp_forward.1} parent=11 // pred_check
        %p165 = pneg %p79
      $region18: #{mlp_forward.1} parent=11 // pred_check_branch
        %167 = sbr.rel (%p165) target = $region20
      $region19: #{mlp_forward.1} parent=11 // pred_region
        _
      $region20: #{mlp_forward.1} parent=11 // pred_fallthru
        _
      // Predicated region
      $region21: #{mlp_forward.1} parent=11 // pred_check
        %p168 = pneg %p100
      $region22: #{mlp_forward.1} parent=11 // pred_check_branch
        %170 = sbr.rel (%p168) target = $region24
      $region23: #{mlp_forward.1} parent=11 // pred_region
        _
      $region24: #{mlp_forward.1} parent=11 // pred_fallthru
        _
      // Predicated region
      $region25: #{mlp_forward.1} parent=11 // pred_check
        %p171 = pneg %p121
      $region26: #{mlp_forward.1} parent=11 // pred_check_branch
        %173 = sbr.rel (%p171) target = $region28
      $region27: #{mlp_forward.1} parent=11 // pred_region
        _
      $region28: #{mlp_forward.1} parent=11 // pred_fallthru
        _
    $region12: #{mlp_forward.1} parent=5 // pred_fallthru
      _
    %p174 = scmp.lt.s32.totalorder %s11, 2
    // Predicated region
    $region29: #{mlp_forward.1} parent=5 // pred_check
      %p175 = pneg %p174
    $region30: #{mlp_forward.1} parent=5 // pred_check_branch
      %177 = sbr.rel (%p175) target = $region32
    $region31: #{mlp_forward.1} parent=5 // pred_region
      // Predicated region
      $region33: #{mlp_forward.1} parent=31 // pred_check
        %p178 = pneg %p31
      $region34: #{mlp_forward.1} parent=31 // pred_check_branch
        %180 = sbr.rel (%p178) target = $region36
      $region35: #{mlp_forward.1} parent=31 // pred_region
        %s181 = smul.u32 16, %s11
        %p182 = scmp.lt.s32.totalorder %s181, 31
        %s183 = scalar_select %p182, %s181, 31
        %s184 = smul.addr %s183, 8
        %s185 = scalar_lea.vmem %s0, %s184
        %s186 = smul.u32 16, %s11
      $region36: #{mlp_forward.1} parent=31 // pred_fallthru
        _
    $region32: #{mlp_forward.1} parent=5 // pred_fallthru
      _
    %p187 = scmp.le.s32.totalorder 1, %s11
    %p188 = scmp.lt.s32.totalorder %s11, 3
    %p189 = pnand %p187, %p188
    %p190 = pneg %p189
    // Predicated region
    $region37: #{mlp_forward.1} parent=5 // pred_check
      _
    $region38: #{mlp_forward.1} parent=5 // pred_check_branch
      %192 = sbr.rel (%p189) target = $region40
    $region39: #{mlp_forward.1} parent=5 // pred_region
      %s193 = ssub.s32 %s11, 1
      %s194 = smul.u32 16, %s16
      %p195 = scmp.lt.s32.totalorder %s194, 31
      %s196 = scalar_select %p195, %s194, 31
      %s197 = smul.addr %s196, 8
      %s198 = scalar_lea.vmem %s0, %s197
      %p199 = pneg %p37
      %p200 = pneg %p34
      %p201 = pneg %p58
      %p202 = pneg %p55
      %p203 = pneg %p79
      %p204 = pneg %p76
      %p205 = pneg %p100
      %p206 = pneg %p97
      %p207 = pneg %p121
      %p208 = pneg %p118
      %p209 = pneg %p147
      %p210 = pneg %p144
      %s211 = smul.u32 16, %s16
      %p212 = scmp.lt.s32.totalorder %s211, 31
      %s213 = scalar_select %p212, %s211, 31
      %s214 = smul.addr %s213, 8
      %s215 = scalar_lea.vmem %s5, %s214
      %s216 = smul.u32 16, %s16
      %p217 = scmp.lt.s32.totalorder %s216, 31
      %s218 = scalar_select %p217, %s216, 31
      %s219 = smul.addr %s218, 8
      %s220 = scalar_lea.vmem %s0, %s219
      %s221 = smul.u32 16, %s16
      %s222 = smul.u32 16, %s16
      %p223 = scmp.lt.s32.totalorder %s222, 31
      %s224 = scalar_select %p223, %s222, 31
      %s225 = smul.addr %s224, 8
      %s226 = scalar_lea.vmem %s5, %s225
      %s227 = smul.u32 16, %s16
      %v228 = vld [vmem:[%s220] sm:$0xff]
      %v229 = vld [vmem:[%s220 + $0x8] sm:$0xff]
      %v230 = vld [vmem:[%s220 + $0x10] sm:$0xff]
      %v231 = vld [vmem:[%s220 + $0x18] sm:$0xff]
      %v232 = vld [vmem:[%s220 + $0x20] sm:$0xff]
      %v233 = vld [vmem:[%s220 + $0x28] sm:$0xff]
      %v234 = vld [vmem:[%s220 + $0x30] sm:$0xff]
      %v235 = vld [vmem:[%s220 + $0x38] sm:$0xff]
      %v236 = vld [vmem:[%s220 + $0x40] sm:$0xff]
      %v237 = vld [vmem:[%s220 + $0x48] sm:$0xff]
      %v238 = vld [vmem:[%s220 + $0x50] sm:$0xff]
      %v239 = vld [vmem:[%s220 + $0x58] sm:$0xff]
      %v240 = vld [vmem:[%s220 + $0x60] sm:$0xff]
      %v241 = vld [vmem:[%s220 + $0x68] sm:$0xff]
      %v242 = vld [vmem:[%s220 + $0x70] sm:$0xff]
      %v243 = vld [vmem:[%s220 + $0x78] sm:$0xff]
      %v244 = vld [vmem:[%s1] sm:$0xf]
      %v245 = vld [vmem:[%s2] sm:$0x1]
      %v247 = vperm.slane %v245, 0
      %vm249 = vcmask 31744
      %v251 = vsel %vm249, %v228, 0
      %v254 = vsel %vm249, %v229, 0
      %v257 = vsel %vm249, %v230, 0
      %v260 = vsel %vm249, %v231, 0
      %v263 = vsel %vm249, %v232, 0
      %v266 = vsel %vm249, %v233, 0
      %v269 = vsel %vm249, %v234, 0
      %v272 = vsel %vm249, %v235, 0
      %v275 = vsel %vm249, %v236, 0
      %v278 = vsel %vm249, %v237, 0
      %v281 = vsel %vm249, %v238, 0
      %v284 = vsel %vm249, %v239, 0
      %v287 = vsel %vm249, %v240, 0
      %v290 = vsel %vm249, %v241, 0
      %v293 = vsel %vm249, %v242, 0
      %v296 = vsel %vm249, %v243, 0
      %vm298 = vcmask 1043456
      %v300 = vsel %vm298, %v244, 0
      %302 = vmatpush.msra.mxu0 0.0
      %303 = vmatpush.msra.mxu0 0.0
      %304 = vmatpush.msra.mxu0 0.0
      %305 = vmatpush.msra.mxu0 0.0
      %306 = vmatpush.msra.mxu0 0.0
      %307 = vmatpush.msra.mxu0 0.0
      %308 = vmatpush.msra.mxu0 0.0
      %309 = vmatpush.msra.mxu0 0.0
      %310 = vmatpush.msra.mxu0 0.0
      %311 = vmatpush.msra.mxu0 0.0
      %312 = vmatpush.msra.mxu0 0.0
      %313 = vmatpush.msra.mxu0 0.0
      %314 = vmatpush.msra.mxu0 0.0
      %315 = vmatpush.msra.mxu0 0.0
      %316 = vmatpush.msra.mxu0 0.0
      %317 = vmatpush.msra.mxu0 %v300
      %318 = vmatmul.f32.gmra.mxu0 %v251
      %v319 = vpop.f32.mrf.mxu0
      %v320 = vadd.f32 %v247, %v319
      %321 = vmatmul.f32.gmra.mxu0 %v254
      %v322 = vpop.f32.mrf.mxu0
      %v323 = vadd.f32 %v247, %v322
      %324 = vmatmul.f32.gmra.mxu0 %v257
      %v325 = vpop.f32.mrf.mxu0
      %v326 = vadd.f32 %v247, %v325
      %327 = vmatmul.f32.gmra.mxu0 %v260
      %v328 = vpop.f32.mrf.mxu0
      %v329 = vadd.f32 %v247, %v328
      %330 = vmatmul.f32.gmra.mxu0 %v263
      %v331 = vpop.f32.mrf.mxu0
      %v332 = vadd.f32 %v247, %v331
      %333 = vmatmul.f32.gmra.mxu0 %v266
      %v334 = vpop.f32.mrf.mxu0
      %v335 = vadd.f32 %v247, %v334
      %336 = vmatmul.f32.gmra.mxu0 %v269
      %v337 = vpop.f32.mrf.mxu0
      %v338 = vadd.f32 %v247, %v337
      %339 = vmatmul.f32.gmra.mxu0 %v272
      %v340 = vpop.f32.mrf.mxu0
      %v341 = vadd.f32 %v247, %v340
      %342 = vmatmul.f32.gmra.mxu0 %v275
      %v343 = vpop.f32.mrf.mxu0
      %v344 = vadd.f32 %v247, %v343
      %345 = vmatmul.f32.gmra.mxu0 %v278
      %v346 = vpop.f32.mrf.mxu0
      %v347 = vadd.f32 %v247, %v346
      %348 = vmatmul.f32.gmra.mxu0 %v281
      %v349 = vpop.f32.mrf.mxu0
      %v350 = vadd.f32 %v247, %v349
      %351 = vmatmul.f32.gmra.mxu0 %v284
      %v352 = vpop.f32.mrf.mxu0
      %v353 = vadd.f32 %v247, %v352
      %354 = vmatmul.f32.gmra.mxu0 %v287
      %v355 = vpop.f32.mrf.mxu0
      %v356 = vadd.f32 %v247, %v355
      %357 = vmatmul.f32.gmra.mxu0 %v290
      %v358 = vpop.f32.mrf.mxu0
      %v359 = vadd.f32 %v247, %v358
      %360 = vmatmul.f32.gmra.mxu0 %v293
      %v361 = vpop.f32.mrf.mxu0
      %v362 = vadd.f32 %v247, %v361
      %363 = vmatmul.f32.gmra.mxu0 %v296
      %v364 = vpop.f32.mrf.mxu0
      %v365 = vadd.f32 %v247, %v364
      %366 = vdwg.mxu0
      %v367 = vxor.u32 %v320, 2147483648
      %v368 = vxor.u32 %v323, 2147483648
      %v369 = vxor.u32 %v326, 2147483648
      %v370 = vxor.u32 %v329, 2147483648
      %v371 = vxor.u32 %v332, 2147483648
      %v372 = vxor.u32 %v335, 2147483648
      %v373 = vxor.u32 %v338, 2147483648
      %v374 = vxor.u32 %v341, 2147483648
      %v375 = vxor.u32 %v344, 2147483648
      %v376 = vxor.u32 %v347, 2147483648
      %v377 = vxor.u32 %v350, 2147483648
      %v378 = vxor.u32 %v353, 2147483648
      %v379 = vxor.u32 %v356, 2147483648
      %v380 = vxor.u32 %v359, 2147483648
      %v381 = vxor.u32 %v362, 2147483648
      %v382 = vxor.u32 %v365, 2147483648
      %v383 = vmul.f32 %v367, 1.442695
      %v384 = vpow.pop %v383
      %v385 = vmul.f32 %v368, 1.442695
      %v386 = vpow.pop %v385
      %v387 = vmul.f32 %v369, 1.442695
      %v388 = vpow.pop %v387
      %v389 = vmul.f32 %v370, 1.442695
      %v390 = vpow.pop %v389
      %v391 = vmul.f32 %v371, 1.442695
      %v392 = vpow.pop %v391
      %v393 = vmul.f32 %v372, 1.442695
      %v394 = vpow.pop %v393
      %v395 = vmul.f32 %v373, 1.442695
      %v396 = vpow.pop %v395
      %v397 = vmul.f32 %v374, 1.442695
      %v398 = vpow.pop %v397
      %v399 = vmul.f32 %v375, 1.442695
      %v400 = vpow.pop %v399
      %v401 = vmul.f32 %v376, 1.442695
      %v402 = vpow.pop %v401
      %v403 = vmul.f32 %v377, 1.442695
      %v404 = vpow.pop %v403
      %v405 = vmul.f32 %v378, 1.442695
      %v406 = vpow.pop %v405
      %v407 = vmul.f32 %v379, 1.442695
      %v408 = vpow.pop %v407
      %v409 = vmul.f32 %v380, 1.442695
      %v410 = vpow.pop %v409
      %v411 = vmul.f32 %v381, 1.442695
      %v412 = vpow.pop %v411
      %v413 = vmul.f32 %v382, 1.442695
      %v414 = vpow.pop %v413
      %v415 = vadd.f32 %v384, 1.0
      %v416 = vadd.f32 %v386, 1.0
      %v417 = vadd.f32 %v388, 1.0
      %v418 = vadd.f32 %v390, 1.0
      %v419 = vadd.f32 %v392, 1.0
      %v420 = vadd.f32 %v394, 1.0
      %v421 = vadd.f32 %v396, 1.0
      %v422 = vadd.f32 %v398, 1.0
      %v423 = vadd.f32 %v400, 1.0
      %v424 = vadd.f32 %v402, 1.0
      %v425 = vadd.f32 %v404, 1.0
      %v426 = vadd.f32 %v406, 1.0
      %v427 = vadd.f32 %v408, 1.0
      %v428 = vadd.f32 %v410, 1.0
      %v429 = vadd.f32 %v412, 1.0
      %v430 = vadd.f32 %v414, 1.0
      %v431 = vrcp.pop %v415
      %v432 = vmul.f32 %v415, %v431
      %v433 = vsub.f32 1.0, %v432
      %v434 = vmul.f32 %v431, %v433
      %v435 = vadd.f32 %v431, %v434
      %vm436 = vweird.f32 %v415
      %vm437 = vweird.f32 %v431
      %vm438 = vmor %vm436, %vm437
      %v439 = vsel %vm438, %v431, %v435
      %v440 = vand.u32 2147483647, %v415
      %vm441 = vcmp.eq.f32.partialorder %v440, 8.507059e+37
      %v442 = vand.u32 %v415, 2147483648
      %v443 = vor.u32 1.1754944e-38, %v442
      %v444 = vsel %vm441, %v443, %v439
      %v445 = vmul.f32 1.0, %v444
      %v446 = vrcp.pop %v416
      %v447 = vmul.f32 %v416, %v446
      %v448 = vsub.f32 1.0, %v447
      %v449 = vmul.f32 %v446, %v448
      %v450 = vadd.f32 %v446, %v449
      %vm451 = vweird.f32 %v416
      %vm452 = vweird.f32 %v446
      %vm453 = vmor %vm451, %vm452
      %v454 = vsel %vm453, %v446, %v450
      %v455 = vand.u32 2147483647, %v416
      %vm456 = vcmp.eq.f32.partialorder %v455, 8.507059e+37
      %v457 = vand.u32 %v416, 2147483648
      %v458 = vor.u32 1.1754944e-38, %v457
      %v459 = vsel %vm456, %v458, %v454
      %v460 = vmul.f32 1.0, %v459
      %v461 = vrcp.pop %v417
      %v462 = vmul.f32 %v417, %v461
      %v463 = vsub.f32 1.0, %v462
      %v464 = vmul.f32 %v461, %v463
      %v465 = vadd.f32 %v461, %v464
      %vm466 = vweird.f32 %v417
      %vm467 = vweird.f32 %v461
      %vm468 = vmor %vm466, %vm467
      %v469 = vsel %vm468, %v461, %v465
      %v470 = vand.u32 2147483647, %v417
      %vm471 = vcmp.eq.f32.partialorder %v470, 8.507059e+37
      %v472 = vand.u32 %v417, 2147483648
      %v473 = vor.u32 1.1754944e-38, %v472
      %v474 = vsel %vm471, %v473, %v469
      %v475 = vmul.f32 1.0, %v474
      %v476 = vrcp.pop %v418
      %v477 = vmul.f32 %v418, %v476
      %v478 = vsub.f32 1.0, %v477
      %v479 = vmul.f32 %v476, %v478
      %v480 = vadd.f32 %v476, %v479
      %vm481 = vweird.f32 %v418
      %vm482 = vweird.f32 %v476
      %vm483 = vmor %vm481, %vm482
      %v484 = vsel %vm483, %v476, %v480
      %v485 = vand.u32 2147483647, %v418
      %vm486 = vcmp.eq.f32.partialorder %v485, 8.507059e+37
      %v487 = vand.u32 %v418, 2147483648
      %v488 = vor.u32 1.1754944e-38, %v487
      %v489 = vsel %vm486, %v488, %v484
      %v490 = vmul.f32 1.0, %v489
      %v491 = vrcp.pop %v419
      %v492 = vmul.f32 %v419, %v491
      %v493 = vsub.f32 1.0, %v492
      %v494 = vmul.f32 %v491, %v493
      %v495 = vadd.f32 %v491, %v494
      %vm496 = vweird.f32 %v419
      %vm497 = vweird.f32 %v491
      %vm498 = vmor %vm496, %vm497
      %v499 = vsel %vm498, %v491, %v495
      %v500 = vand.u32 2147483647, %v419
      %vm501 = vcmp.eq.f32.partialorder %v500, 8.507059e+37
      %v502 = vand.u32 %v419, 2147483648
      %v503 = vor.u32 1.1754944e-38, %v502
      %v504 = vsel %vm501, %v503, %v499
      %v505 = vmul.f32 1.0, %v504
      %v506 = vrcp.pop %v420
      %v507 = vmul.f32 %v420, %v506
      %v508 = vsub.f32 1.0, %v507
      %v509 = vmul.f32 %v506, %v508
      %v510 = vadd.f32 %v506, %v509
      %vm511 = vweird.f32 %v420
      %vm512 = vweird.f32 %v506
      %vm513 = vmor %vm511, %vm512
      %v514 = vsel %vm513, %v506, %v510
      %v515 = vand.u32 2147483647, %v420
      %vm516 = vcmp.eq.f32.partialorder %v515, 8.507059e+37
      %v517 = vand.u32 %v420, 2147483648
      %v518 = vor.u32 1.1754944e-38, %v517
      %v519 = vsel %vm516, %v518, %v514
      %v520 = vmul.f32 1.0, %v519
      %v521 = vrcp.pop %v421
      %v522 = vmul.f32 %v421, %v521
      %v523 = vsub.f32 1.0, %v522
      %v524 = vmul.f32 %v521, %v523
      %v525 = vadd.f32 %v521, %v524
      %vm526 = vweird.f32 %v421
      %vm527 = vweird.f32 %v521
      %vm528 = vmor %vm526, %vm527
      %v529 = vsel %vm528, %v521, %v525
      %v530 = vand.u32 2147483647, %v421
      %vm531 = vcmp.eq.f32.partialorder %v530, 8.507059e+37
      %v532 = vand.u32 %v421, 2147483648
      %v533 = vor.u32 1.1754944e-38, %v532
      %v534 = vsel %vm531, %v533, %v529
      %v535 = vmul.f32 1.0, %v534
      %v536 = vrcp.pop %v422
      %v537 = vmul.f32 %v422, %v536
      %v538 = vsub.f32 1.0, %v537
      %v539 = vmul.f32 %v536, %v538
      %v540 = vadd.f32 %v536, %v539
      %vm541 = vweird.f32 %v422
      %vm542 = vweird.f32 %v536
      %vm543 = vmor %vm541, %vm542
      %v544 = vsel %vm543, %v536, %v540
      %v545 = vand.u32 2147483647, %v422
      %vm546 = vcmp.eq.f32.partialorder %v545, 8.507059e+37
      %v547 = vand.u32 %v422, 2147483648
      %v548 = vor.u32 1.1754944e-38, %v547
      %v549 = vsel %vm546, %v548, %v544
      %v550 = vmul.f32 1.0, %v549
      %v551 = vrcp.pop %v423
      %v552 = vmul.f32 %v423, %v551
      %v553 = vsub.f32 1.0, %v552
      %v554 = vmul.f32 %v551, %v553
      %v555 = vadd.f32 %v551, %v554
      %vm556 = vweird.f32 %v423
      %vm557 = vweird.f32 %v551
      %vm558 = vmor %vm556, %vm557
      %v559 = vsel %vm558, %v551, %v555
      %v560 = vand.u32 2147483647, %v423
      %vm561 = vcmp.eq.f32.partialorder %v560, 8.507059e+37
      %v562 = vand.u32 %v423, 2147483648
      %v563 = vor.u32 1.1754944e-38, %v562
      %v564 = vsel %vm561, %v563, %v559
      %v565 = vmul.f32 1.0, %v564
      %v566 = vrcp.pop %v424
      %v567 = vmul.f32 %v424, %v566
      %v568 = vsub.f32 1.0, %v567
      %v569 = vmul.f32 %v566, %v568
      %v570 = vadd.f32 %v566, %v569
      %vm571 = vweird.f32 %v424
      %vm572 = vweird.f32 %v566
      %vm573 = vmor %vm571, %vm572
      %v574 = vsel %vm573, %v566, %v570
      %v575 = vand.u32 2147483647, %v424
      %vm576 = vcmp.eq.f32.partialorder %v575, 8.507059e+37
      %v577 = vand.u32 %v424, 2147483648
      %v578 = vor.u32 1.1754944e-38, %v577
      %v579 = vsel %vm576, %v578, %v574
      %v580 = vmul.f32 1.0, %v579
      %v581 = vrcp.pop %v425
      %v582 = vmul.f32 %v425, %v581
      %v583 = vsub.f32 1.0, %v582
      %v584 = vmul.f32 %v581, %v583
      %v585 = vadd.f32 %v581, %v584
      %vm586 = vweird.f32 %v425
      %vm587 = vweird.f32 %v581
      %vm588 = vmor %vm586, %vm587
      %v589 = vsel %vm588, %v581, %v585
      %v590 = vand.u32 2147483647, %v425
      %vm591 = vcmp.eq.f32.partialorder %v590, 8.507059e+37
      %v592 = vand.u32 %v425, 2147483648
      %v593 = vor.u32 1.1754944e-38, %v592
      %v594 = vsel %vm591, %v593, %v589
      %v595 = vmul.f32 1.0, %v594
      %v596 = vrcp.pop %v426
      %v597 = vmul.f32 %v426, %v596
      %v598 = vsub.f32 1.0, %v597
      %v599 = vmul.f32 %v596, %v598
      %v600 = vadd.f32 %v596, %v599
      %vm601 = vweird.f32 %v426
      %vm602 = vweird.f32 %v596
      %vm603 = vmor %vm601, %vm602
      %v604 = vsel %vm603, %v596, %v600
      %v605 = vand.u32 2147483647, %v426
      %vm606 = vcmp.eq.f32.partialorder %v605, 8.507059e+37
      %v607 = vand.u32 %v426, 2147483648
      %v608 = vor.u32 1.1754944e-38, %v607
      %v609 = vsel %vm606, %v608, %v604
      %v610 = vmul.f32 1.0, %v609
      %v611 = vrcp.pop %v427
      %v612 = vmul.f32 %v427, %v611
      %v613 = vsub.f32 1.0, %v612
      %v614 = vmul.f32 %v611, %v613
      %v615 = vadd.f32 %v611, %v614
      %vm616 = vweird.f32 %v427
      %vm617 = vweird.f32 %v611
      %vm618 = vmor %vm616, %vm617
      %v619 = vsel %vm618, %v611, %v615
      %v620 = vand.u32 2147483647, %v427
      %vm621 = vcmp.eq.f32.partialorder %v620, 8.507059e+37
      %v622 = vand.u32 %v427, 2147483648
      %v623 = vor.u32 1.1754944e-38, %v622
      %v624 = vsel %vm621, %v623, %v619
      %v625 = vmul.f32 1.0, %v624
      %v626 = vrcp.pop %v428
      %v627 = vmul.f32 %v428, %v626
      %v628 = vsub.f32 1.0, %v627
      %v629 = vmul.f32 %v626, %v628
      %v630 = vadd.f32 %v626, %v629
      %vm631 = vweird.f32 %v428
      %vm632 = vweird.f32 %v626
      %vm633 = vmor %vm631, %vm632
      %v634 = vsel %vm633, %v626, %v630
      %v635 = vand.u32 2147483647, %v428
      %vm636 = vcmp.eq.f32.partialorder %v635, 8.507059e+37
      %v637 = vand.u32 %v428, 2147483648
      %v638 = vor.u32 1.1754944e-38, %v637
      %v639 = vsel %vm636, %v638, %v634
      %v640 = vmul.f32 1.0, %v639
      %v641 = vrcp.pop %v429
      %v642 = vmul.f32 %v429, %v641
      %v643 = vsub.f32 1.0, %v642
      %v644 = vmul.f32 %v641, %v643
      %v645 = vadd.f32 %v641, %v644
      %vm646 = vweird.f32 %v429
      %vm647 = vweird.f32 %v641
      %vm648 = vmor %vm646, %vm647
      %v649 = vsel %vm648, %v641, %v645
      %v650 = vand.u32 2147483647, %v429
      %vm651 = vcmp.eq.f32.partialorder %v650, 8.507059e+37
      %v652 = vand.u32 %v429, 2147483648
      %v653 = vor.u32 1.1754944e-38, %v652
      %v654 = vsel %vm651, %v653, %v649
      %v655 = vmul.f32 1.0, %v654
      %v656 = vrcp.pop %v430
      %v657 = vmul.f32 %v430, %v656
      %v658 = vsub.f32 1.0, %v657
      %v659 = vmul.f32 %v656, %v658
      %v660 = vadd.f32 %v656, %v659
      %vm661 = vweird.f32 %v430
      %vm662 = vweird.f32 %v656
      %vm663 = vmor %vm661, %vm662
      %v664 = vsel %vm663, %v656, %v660
      %v665 = vand.u32 2147483647, %v430
      %vm666 = vcmp.eq.f32.partialorder %v665, 8.507059e+37
      %v667 = vand.u32 %v430, 2147483648
      %v668 = vor.u32 1.1754944e-38, %v667
      %v669 = vsel %vm666, %v668, %v664
      %v670 = vmul.f32 1.0, %v669
      %v671 = vld [vmem:[%s3] sm:$0xff]
      %v672 = vld [vmem:[%s3 + $0x8] sm:$0xff]
      %v673 = vld [vmem:[%s3 + $0x10] sm:$0xff]
      %v674 = vld [vmem:[%s3 + $0x18] sm:$0xff]
      %v675 = vld [vmem:[%s4] sm:$0x1]
      %v677 = vperm.slane %v675, 0
      %vm679 = vcmask 261120
      %v681 = vsel %vm679, %v445, 0
      %v684 = vsel %vm679, %v460, 0
      %v687 = vsel %vm679, %v475, 0
      %v690 = vsel %vm679, %v490, 0
      %v693 = vsel %vm679, %v505, 0
      %v696 = vsel %vm679, %v520, 0
      %v699 = vsel %vm679, %v535, 0
      %v702 = vsel %vm679, %v550, 0
      %v705 = vsel %vm679, %v565, 0
      %v708 = vsel %vm679, %v580, 0
      %v711 = vsel %vm679, %v595, 0
      %v714 = vsel %vm679, %v610, 0
      %v717 = vsel %vm679, %v625, 0
      %v720 = vsel %vm679, %v640, 0
      %v723 = vsel %vm679, %v655, 0
      %v726 = vsel %vm679, %v670, 0
      %728 = vmatpush.msra.mxu0 0.0
      %729 = vmatpush.msra.mxu0 0.0
      %730 = vmatpush.msra.mxu0 0.0
      %731 = vmatpush.msra.mxu0 0.0
      %732 = vmatpush.msra.mxu0 0.0
      %733 = vmatpush.msra.mxu0 0.0
      %734 = vmatpush.msra.mxu0 0.0
      %735 = vmatpush.msra.mxu0 0.0
      %736 = vmatpush.msra.mxu0 0.0
      %737 = vmatpush.msra.mxu0 0.0
      %738 = vmatpush.msra.mxu0 0.0
      %739 = vmatpush.msra.mxu0 0.0
      %740 = vmatpush.msra.mxu0 %v674
      %741 = vmatpush.msra.mxu0 %v673
      %742 = vmatpush.msra.mxu0 %v672
      %743 = vmatpush.msra.mxu0 %v671
      %744 = vmatmul.f32.gmra.mxu0 %v681
      %v745 = vpop.f32.mrf.mxu0
      %v746 = vadd.f32 %v677, %v745
      %747 = vmatmul.f32.gmra.mxu0 %v684
      %v748 = vpop.f32.mrf.mxu0
      %v749 = vadd.f32 %v677, %v748
      %750 = vmatmul.f32.gmra.mxu0 %v687
      %v751 = vpop.f32.mrf.mxu0
      %v752 = vadd.f32 %v677, %v751
      %753 = vmatmul.f32.gmra.mxu0 %v690
      %v754 = vpop.f32.mrf.mxu0
      %v755 = vadd.f32 %v677, %v754
      %756 = vmatmul.f32.gmra.mxu0 %v693
      %v757 = vpop.f32.mrf.mxu0
      %v758 = vadd.f32 %v677, %v757
      %759 = vmatmul.f32.gmra.mxu0 %v696
      %v760 = vpop.f32.mrf.mxu0
      %v761 = vadd.f32 %v677, %v760
      %762 = vmatmul.f32.gmra.mxu0 %v699
      %v763 = vpop.f32.mrf.mxu0
      %v764 = vadd.f32 %v677, %v763
      %765 = vmatmul.f32.gmra.mxu0 %v702
      %v766 = vpop.f32.mrf.mxu0
      %v767 = vadd.f32 %v677, %v766
      %768 = vmatmul.f32.gmra.mxu0 %v705
      %v769 = vpop.f32.mrf.mxu0
      %v770 = vadd.f32 %v677, %v769
      %771 = vmatmul.f32.gmra.mxu0 %v708
      %v772 = vpop.f32.mrf.mxu0
      %v773 = vadd.f32 %v677, %v772
      %774 = vmatmul.f32.gmra.mxu0 %v711
      %v775 = vpop.f32.mrf.mxu0
      %v776 = vadd.f32 %v677, %v775
      %777 = vmatmul.f32.gmra.mxu0 %v714
      %v778 = vpop.f32.mrf.mxu0
      %v779 = vadd.f32 %v677, %v778
      %780 = vmatmul.f32.gmra.mxu0 %v717
      %v781 = vpop.f32.mrf.mxu0
      %v782 = vadd.f32 %v677, %v781
      %783 = vmatmul.f32.gmra.mxu0 %v720
      %v784 = vpop.f32.mrf.mxu0
      %v785 = vadd.f32 %v677, %v784
      %786 = vmatmul.f32.gmra.mxu0 %v723
      %v787 = vpop.f32.mrf.mxu0
      %v788 = vadd.f32 %v677, %v787
      %789 = vmatmul.f32.gmra.mxu0 %v726
      %v790 = vpop.f32.mrf.mxu0
      %v791 = vadd.f32 %v677, %v790
      %792 = vdwg.mxu0
      %vm793 = vcmask 64512
      %v794 = vsel %vm793, %v746, -inf
      %795 = vmax.xlane.f32.xlu0 %v794
      %v796 = vpop.xlane.xlu0 %795
      %v797 = vsel %vm793, %v749, -inf
      %798 = vmax.xlane.f32.xlu0 %v797
      %v799 = vpop.xlane.xlu0 %798
      %v800 = vsel %vm793, %v752, -inf
      %801 = vmax.xlane.f32.xlu0 %v800
      %v802 = vpop.xlane.xlu0 %801
      %v803 = vsel %vm793, %v755, -inf
      %804 = vmax.xlane.f32.xlu0 %v803
      %v805 = vpop.xlane.xlu0 %804
      %v806 = vsel %vm793, %v758, -inf
      %807 = vmax.xlane.f32.xlu0 %v806
      %v808 = vpop.xlane.xlu0 %807
      %v809 = vsel %vm793, %v761, -inf
      %810 = vmax.xlane.f32.xlu0 %v809
      %v811 = vpop.xlane.xlu0 %810
      %v812 = vsel %vm793, %v764, -inf
      %813 = vmax.xlane.f32.xlu0 %v812
      %v814 = vpop.xlane.xlu0 %813
      %v815 = vsel %vm793, %v767, -inf
      %816 = vmax.xlane.f32.xlu0 %v815
      %v817 = vpop.xlane.xlu0 %816
      %v818 = vsel %vm793, %v770, -inf
      %819 = vmax.xlane.f32.xlu0 %v818
      %v820 = vpop.xlane.xlu0 %819
      %v821 = vsel %vm793, %v773, -inf
      %822 = vmax.xlane.f32.xlu0 %v821
      %v823 = vpop.xlane.xlu0 %822
      %v824 = vsel %vm793, %v776, -inf
      %825 = vmax.xlane.f32.xlu0 %v824
      %v826 = vpop.xlane.xlu0 %825
      %v827 = vsel %vm793, %v779, -inf
      %828 = vmax.xlane.f32.xlu0 %v827
      %v829 = vpop.xlane.xlu0 %828
      %v830 = vsel %vm793, %v782, -inf
      %831 = vmax.xlane.f32.xlu0 %v830
      %v832 = vpop.xlane.xlu0 %831
      %v833 = vsel %vm793, %v785, -inf
      %834 = vmax.xlane.f32.xlu0 %v833
      %v835 = vpop.xlane.xlu0 %834
      %v836 = vsel %vm793, %v788, -inf
      %837 = vmax.xlane.f32.xlu0 %v836
      %v838 = vpop.xlane.xlu0 %837
      %v839 = vsel %vm793, %v791, -inf
      %840 = vmax.xlane.f32.xlu0 %v839
      %v841 = vpop.xlane.xlu0 %840
      %v842 = vsub.f32 %v746, %v796
      %v843 = vsub.f32 %v749, %v799
      %v844 = vsub.f32 %v752, %v802
      %v845 = vsub.f32 %v755, %v805
      %v846 = vsub.f32 %v758, %v808
      %v847 = vsub.f32 %v761, %v811
      %v848 = vsub.f32 %v764, %v814
      %v849 = vsub.f32 %v767, %v817
      %v850 = vsub.f32 %v770, %v820
      %v851 = vsub.f32 %v773, %v823
      %v852 = vsub.f32 %v776, %v826
      %v853 = vsub.f32 %v779, %v829
      %v854 = vsub.f32 %v782, %v832
      %v855 = vsub.f32 %v785, %v835
      %v856 = vsub.f32 %v788, %v838
      %v857 = vsub.f32 %v791, %v841
      %v858 = vmul.f32 %v842, 1.442695
      %v859 = vpow.pop %v858
      %v860 = vmul.f32 %v843, 1.442695
      %v861 = vpow.pop %v860
      %v862 = vmul.f32 %v844, 1.442695
      %v863 = vpow.pop %v862
      %v864 = vmul.f32 %v845, 1.442695
      %v865 = vpow.pop %v864
      %v866 = vmul.f32 %v846, 1.442695
      %v867 = vpow.pop %v866
      %v868 = vmul.f32 %v847, 1.442695
      %v869 = vpow.pop %v868
      %v870 = vmul.f32 %v848, 1.442695
      %v871 = vpow.pop %v870
      %v872 = vmul.f32 %v849, 1.442695
      %v873 = vpow.pop %v872
      %v874 = vmul.f32 %v850, 1.442695
      %v875 = vpow.pop %v874
      %v876 = vmul.f32 %v851, 1.442695
      %v877 = vpow.pop %v876
      %v878 = vmul.f32 %v852, 1.442695
      %v879 = vpow.pop %v878
      %v880 = vmul.f32 %v853, 1.442695
      %v881 = vpow.pop %v880
      %v882 = vmul.f32 %v854, 1.442695
      %v883 = vpow.pop %v882
      %v884 = vmul.f32 %v855, 1.442695
      %v885 = vpow.pop %v884
      %v886 = vmul.f32 %v856, 1.442695
      %v887 = vpow.pop %v886
      %v888 = vmul.f32 %v857, 1.442695
      %v889 = vpow.pop %v888
      %v890 = vsel %vm793, %v859, 0.0
      %891 = vadd.xlane.f32.xlu0 %v890
      %v892 = vpop.xlane.xlu0 %891
      %v893 = vsel %vm793, %v861, 0.0
      %894 = vadd.xlane.f32.xlu0 %v893
      %v895 = vpop.xlane.xlu0 %894
      %v896 = vsel %vm793, %v863, 0.0
      %897 = vadd.xlane.f32.xlu0 %v896
      %v898 = vpop.xlane.xlu0 %897
      %v899 = vsel %vm793, %v865, 0.0
      %900 = vadd.xlane.f32.xlu0 %v899
      %v901 = vpop.xlane.xlu0 %900
      %v902 = vsel %vm793, %v867, 0.0
      %903 = vadd.xlane.f32.xlu0 %v902
      %v904 = vpop.xlane.xlu0 %903
      %v905 = vsel %vm793, %v869, 0.0
      %906 = vadd.xlane.f32.xlu0 %v905
      %v907 = vpop.xlane.xlu0 %906
      %v908 = vsel %vm793, %v871, 0.0
      %909 = vadd.xlane.f32.xlu0 %v908
      %v910 = vpop.xlane.xlu0 %909
      %v911 = vsel %vm793, %v873, 0.0
      %912 = vadd.xlane.f32.xlu0 %v911
      %v913 = vpop.xlane.xlu0 %912
      %v914 = vsel %vm793, %v875, 0.0
      %915 = vadd.xlane.f32.xlu0 %v914
      %v916 = vpop.xlane.xlu0 %915
      %v917 = vsel %vm793, %v877, 0.0
      %918 = vadd.xlane.f32.xlu0 %v917
      %v919 = vpop.xlane.xlu0 %918
      %v920 = vsel %vm793, %v879, 0.0
      %921 = vadd.xlane.f32.xlu0 %v920
      %v922 = vpop.xlane.xlu0 %921
      %v923 = vsel %vm793, %v881, 0.0
      %924 = vadd.xlane.f32.xlu0 %v923
      %v925 = vpop.xlane.xlu0 %924
      %v926 = vsel %vm793, %v883, 0.0
      %927 = vadd.xlane.f32.xlu0 %v926
      %v928 = vpop.xlane.xlu0 %927
      %v929 = vsel %vm793, %v885, 0.0
      %930 = vadd.xlane.f32.xlu0 %v929
      %v931 = vpop.xlane.xlu0 %930
      %v932 = vsel %vm793, %v887, 0.0
      %933 = vadd.xlane.f32.xlu0 %v932
      %v934 = vpop.xlane.xlu0 %933
      %v935 = vsel %vm793, %v889, 0.0
      %936 = vadd.xlane.f32.xlu0 %v935
      %v937 = vpop.xlane.xlu0 %936
      %v938 = vrcp.pop %v892
      %v939 = vmul.f32 %v892, %v938
      %v940 = vsub.f32 1.0, %v939
      %v941 = vmul.f32 %v938, %v940
      %v942 = vadd.f32 %v938, %v941
      %vm943 = vweird.f32 %v892
      %vm944 = vweird.f32 %v938
      %vm945 = vmor %vm943, %vm944
      %v946 = vsel %vm945, %v938, %v942
      %v947 = vand.u32 2147483647, %v892
      %vm948 = vcmp.eq.f32.partialorder %v947, 8.507059e+37
      %v949 = vand.u32 %v892, 2147483648
      %v950 = vor.u32 1.1754944e-38, %v949
      %v951 = vsel %vm948, %v950, %v946
      %v952 = vmul.f32 %v859, %v951
      %v953 = vrcp.pop %v895
      %v954 = vmul.f32 %v895, %v953
      %v955 = vsub.f32 1.0, %v954
      %v956 = vmul.f32 %v953, %v955
      %v957 = vadd.f32 %v953, %v956
      %vm958 = vweird.f32 %v895
      %vm959 = vweird.f32 %v953
      %vm960 = vmor %vm958, %vm959
      %v961 = vsel %vm960, %v953, %v957
      %v962 = vand.u32 2147483647, %v895
      %vm963 = vcmp.eq.f32.partialorder %v962, 8.507059e+37
      %v964 = vand.u32 %v895, 2147483648
      %v965 = vor.u32 1.1754944e-38, %v964
      %v966 = vsel %vm963, %v965, %v961
      %v967 = vmul.f32 %v861, %v966
      %v968 = vrcp.pop %v898
      %v969 = vmul.f32 %v898, %v968
      %v970 = vsub.f32 1.0, %v969
      %v971 = vmul.f32 %v968, %v970
      %v972 = vadd.f32 %v968, %v971
      %vm973 = vweird.f32 %v898
      %vm974 = vweird.f32 %v968
      %vm975 = vmor %vm973, %vm974
      %v976 = vsel %vm975, %v968, %v972
      %v977 = vand.u32 2147483647, %v898
      %vm978 = vcmp.eq.f32.partialorder %v977, 8.507059e+37
      %v979 = vand.u32 %v898, 2147483648
      %v980 = vor.u32 1.1754944e-38, %v979
      %v981 = vsel %vm978, %v980, %v976
      %v982 = vmul.f32 %v863, %v981
      %v983 = vrcp.pop %v901
      %v984 = vmul.f32 %v901, %v983
      %v985 = vsub.f32 1.0, %v984
      %v986 = vmul.f32 %v983, %v985
      %v987 = vadd.f32 %v983, %v986
      %vm988 = vweird.f32 %v901
      %vm989 = vweird.f32 %v983
      %vm990 = vmor %vm988, %vm989
      %v991 = vsel %vm990, %v983, %v987
      %v992 = vand.u32 2147483647, %v901
      %vm993 = vcmp.eq.f32.partialorder %v992, 8.507059e+37
      %v994 = vand.u32 %v901, 2147483648
      %v995 = vor.u32 1.1754944e-38, %v994
      %v996 = vsel %vm993, %v995, %v991
      %v997 = vmul.f32 %v865, %v996
      %v998 = vrcp.pop %v904
      %v999 = vmul.f32 %v904, %v998
      %v1000 = vsub.f32 1.0, %v999
      %v1001 = vmul.f32 %v998, %v1000
      %v1002 = vadd.f32 %v998, %v1001
      %vm1003 = vweird.f32 %v904
      %vm1004 = vweird.f32 %v998
      %vm1005 = vmor %vm1003, %vm1004
      %v1006 = vsel %vm1005, %v998, %v1002
      %v1007 = vand.u32 2147483647, %v904
      %vm1008 = vcmp.eq.f32.partialorder %v1007, 8.507059e+37
      %v1009 = vand.u32 %v904, 2147483648
      %v1010 = vor.u32 1.1754944e-38, %v1009
      %v1011 = vsel %vm1008, %v1010, %v1006
      %v1012 = vmul.f32 %v867, %v1011
      %v1013 = vrcp.pop %v907
      %v1014 = vmul.f32 %v907, %v1013
      %v1015 = vsub.f32 1.0, %v1014
      %v1016 = vmul.f32 %v1013, %v1015
      %v1017 = vadd.f32 %v1013, %v1016
      %vm1018 = vweird.f32 %v907
      %vm1019 = vweird.f32 %v1013
      %vm1020 = vmor %vm1018, %vm1019
      %v1021 = vsel %vm1020, %v1013, %v1017
      %v1022 = vand.u32 2147483647, %v907
      %vm1023 = vcmp.eq.f32.partialorder %v1022, 8.507059e+37
      %v1024 = vand.u32 %v907, 2147483648
      %v1025 = vor.u32 1.1754944e-38, %v1024
      %v1026 = vsel %vm1023, %v1025, %v1021
      %v1027 = vmul.f32 %v869, %v1026
      %v1028 = vrcp.pop %v910
      %v1029 = vmul.f32 %v910, %v1028
      %v1030 = vsub.f32 1.0, %v1029
      %v1031 = vmul.f32 %v1028, %v1030
      %v1032 = vadd.f32 %v1028, %v1031
      %vm1033 = vweird.f32 %v910
      %vm1034 = vweird.f32 %v1028
      %vm1035 = vmor %vm1033, %vm1034
      %v1036 = vsel %vm1035, %v1028, %v1032
      %v1037 = vand.u32 2147483647, %v910
      %vm1038 = vcmp.eq.f32.partialorder %v1037, 8.507059e+37
      %v1039 = vand.u32 %v910, 2147483648
      %v1040 = vor.u32 1.1754944e-38, %v1039
      %v1041 = vsel %vm1038, %v1040, %v1036
      %v1042 = vmul.f32 %v871, %v1041
      %v1043 = vrcp.pop %v913
      %v1044 = vmul.f32 %v913, %v1043
      %v1045 = vsub.f32 1.0, %v1044
      %v1046 = vmul.f32 %v1043, %v1045
      %v1047 = vadd.f32 %v1043, %v1046
      %vm1048 = vweird.f32 %v913
      %vm1049 = vweird.f32 %v1043
      %vm1050 = vmor %vm1048, %vm1049
      %v1051 = vsel %vm1050, %v1043, %v1047
      %v1052 = vand.u32 2147483647, %v913
      %vm1053 = vcmp.eq.f32.partialorder %v1052, 8.507059e+37
      %v1054 = vand.u32 %v913, 2147483648
      %v1055 = vor.u32 1.1754944e-38, %v1054
      %v1056 = vsel %vm1053, %v1055, %v1051
      %v1057 = vmul.f32 %v873, %v1056
      %v1058 = vrcp.pop %v916
      %v1059 = vmul.f32 %v916, %v1058
      %v1060 = vsub.f32 1.0, %v1059
      %v1061 = vmul.f32 %v1058, %v1060
      %v1062 = vadd.f32 %v1058, %v1061
      %vm1063 = vweird.f32 %v916
      %vm1064 = vweird.f32 %v1058
      %vm1065 = vmor %vm1063, %vm1064
      %v1066 = vsel %vm1065, %v1058, %v1062
      %v1067 = vand.u32 2147483647, %v916
      %vm1068 = vcmp.eq.f32.partialorder %v1067, 8.507059e+37
      %v1069 = vand.u32 %v916, 2147483648
      %v1070 = vor.u32 1.1754944e-38, %v1069
      %v1071 = vsel %vm1068, %v1070, %v1066
      %v1072 = vmul.f32 %v875, %v1071
      %v1073 = vrcp.pop %v919
      %v1074 = vmul.f32 %v919, %v1073
      %v1075 = vsub.f32 1.0, %v1074
      %v1076 = vmul.f32 %v1073, %v1075
      %v1077 = vadd.f32 %v1073, %v1076
      %vm1078 = vweird.f32 %v919
      %vm1079 = vweird.f32 %v1073
      %vm1080 = vmor %vm1078, %vm1079
      %v1081 = vsel %vm1080, %v1073, %v1077
      %v1082 = vand.u32 2147483647, %v919
      %vm1083 = vcmp.eq.f32.partialorder %v1082, 8.507059e+37
      %v1084 = vand.u32 %v919, 2147483648
      %v1085 = vor.u32 1.1754944e-38, %v1084
      %v1086 = vsel %vm1083, %v1085, %v1081
      %v1087 = vmul.f32 %v877, %v1086
      %v1088 = vrcp.pop %v922
      %v1089 = vmul.f32 %v922, %v1088
      %v1090 = vsub.f32 1.0, %v1089
      %v1091 = vmul.f32 %v1088, %v1090
      %v1092 = vadd.f32 %v1088, %v1091
      %vm1093 = vweird.f32 %v922
      %vm1094 = vweird.f32 %v1088
      %vm1095 = vmor %vm1093, %vm1094
      %v1096 = vsel %vm1095, %v1088, %v1092
      %v1097 = vand.u32 2147483647, %v922
      %vm1098 = vcmp.eq.f32.partialorder %v1097, 8.507059e+37
      %v1099 = vand.u32 %v922, 2147483648
      %v1100 = vor.u32 1.1754944e-38, %v1099
      %v1101 = vsel %vm1098, %v1100, %v1096
      %v1102 = vmul.f32 %v879, %v1101
      %v1103 = vrcp.pop %v925
      %v1104 = vmul.f32 %v925, %v1103
      %v1105 = vsub.f32 1.0, %v1104
      %v1106 = vmul.f32 %v1103, %v1105
      %v1107 = vadd.f32 %v1103, %v1106
      %vm1108 = vweird.f32 %v925
      %vm1109 = vweird.f32 %v1103
      %vm1110 = vmor %vm1108, %vm1109
      %v1111 = vsel %vm1110, %v1103, %v1107
      %v1112 = vand.u32 2147483647, %v925
      %vm1113 = vcmp.eq.f32.partialorder %v1112, 8.507059e+37
      %v1114 = vand.u32 %v925, 2147483648
      %v1115 = vor.u32 1.1754944e-38, %v1114
      %v1116 = vsel %vm1113, %v1115, %v1111
      %v1117 = vmul.f32 %v881, %v1116
      %v1118 = vrcp.pop %v928
      %v1119 = vmul.f32 %v928, %v1118
      %v1120 = vsub.f32 1.0, %v1119
      %v1121 = vmul.f32 %v1118, %v1120
      %v1122 = vadd.f32 %v1118, %v1121
      %vm1123 = vweird.f32 %v928
      %vm1124 = vweird.f32 %v1118
      %vm1125 = vmor %vm1123, %vm1124
      %v1126 = vsel %vm1125, %v1118, %v1122
      %v1127 = vand.u32 2147483647, %v928
      %vm1128 = vcmp.eq.f32.partialorder %v1127, 8.507059e+37
      %v1129 = vand.u32 %v928, 2147483648
      %v1130 = vor.u32 1.1754944e-38, %v1129
      %v1131 = vsel %vm1128, %v1130, %v1126
      %v1132 = vmul.f32 %v883, %v1131
      %v1133 = vrcp.pop %v931
      %v1134 = vmul.f32 %v931, %v1133
      %v1135 = vsub.f32 1.0, %v1134
      %v1136 = vmul.f32 %v1133, %v1135
      %v1137 = vadd.f32 %v1133, %v1136
      %vm1138 = vweird.f32 %v931
      %vm1139 = vweird.f32 %v1133
      %vm1140 = vmor %vm1138, %vm1139
      %v1141 = vsel %vm1140, %v1133, %v1137
      %v1142 = vand.u32 2147483647, %v931
      %vm1143 = vcmp.eq.f32.partialorder %v1142, 8.507059e+37
      %v1144 = vand.u32 %v931, 2147483648
      %v1145 = vor.u32 1.1754944e-38, %v1144
      %v1146 = vsel %vm1143, %v1145, %v1141
      %v1147 = vmul.f32 %v885, %v1146
      %v1148 = vrcp.pop %v934
      %v1149 = vmul.f32 %v934, %v1148
      %v1150 = vsub.f32 1.0, %v1149
      %v1151 = vmul.f32 %v1148, %v1150
      %v1152 = vadd.f32 %v1148, %v1151
      %vm1153 = vweird.f32 %v934
      %vm1154 = vweird.f32 %v1148
      %vm1155 = vmor %vm1153, %vm1154
      %v1156 = vsel %vm1155, %v1148, %v1152
      %v1157 = vand.u32 2147483647, %v934
      %vm1158 = vcmp.eq.f32.partialorder %v1157, 8.507059e+37
      %v1159 = vand.u32 %v934, 2147483648
      %v1160 = vor.u32 1.1754944e-38, %v1159
      %v1161 = vsel %vm1158, %v1160, %v1156
      %v1162 = vmul.f32 %v887, %v1161
      %v1163 = vrcp.pop %v937
      %v1164 = vmul.f32 %v937, %v1163
      %v1165 = vsub.f32 1.0, %v1164
      %v1166 = vmul.f32 %v1163, %v1165
      %v1167 = vadd.f32 %v1163, %v1166
      %vm1168 = vweird.f32 %v937
      %vm1169 = vweird.f32 %v1163
      %vm1170 = vmor %vm1168, %vm1169
      %v1171 = vsel %vm1170, %v1163, %v1167
      %v1172 = vand.u32 2147483647, %v937
      %vm1173 = vcmp.eq.f32.partialorder %v1172, 8.507059e+37
      %v1174 = vand.u32 %v937, 2147483648
      %v1175 = vor.u32 1.1754944e-38, %v1174
      %v1176 = vsel %vm1173, %v1175, %v1171
      %v1177 = vmul.f32 %v889, %v1176
      %1178 = vst.msk [vmem:[%s226] sm:$0xff] %vm793, %v952
      %1179 = vst.msk [vmem:[%s226 + $0x8] sm:$0xff] %vm793, %v967
      %1180 = vst.msk [vmem:[%s226 + $0x10] sm:$0xff] %vm793, %v982
      %1181 = vst.msk [vmem:[%s226 + $0x18] sm:$0xff] %vm793, %v997
      %1182 = vst.msk [vmem:[%s226 + $0x20] sm:$0xff] %vm793, %v1012
      %1183 = vst.msk [vmem:[%s226 + $0x28] sm:$0xff] %vm793, %v1027
      %1184 = vst.msk [vmem:[%s226 + $0x30] sm:$0xff] %vm793, %v1042
      %1185 = vst.msk [vmem:[%s226 + $0x38] sm:$0xff] %vm793, %v1057
      %1186 = vst.msk [vmem:[%s226 + $0x40] sm:$0xff] %vm793, %v1072
      %1187 = vst.msk [vmem:[%s226 + $0x48] sm:$0xff] %vm793, %v1087
      %1188 = vst.msk [vmem:[%s226 + $0x50] sm:$0xff] %vm793, %v1102
      %1189 = vst.msk [vmem:[%s226 + $0x58] sm:$0xff] %vm793, %v1117
      %1190 = vst.msk [vmem:[%s226 + $0x60] sm:$0xff] %vm793, %v1132
      %1191 = vst.msk [vmem:[%s226 + $0x68] sm:$0xff] %vm793, %v1147
      %1192 = vst.msk [vmem:[%s226 + $0x70] sm:$0xff] %vm793, %v1162
      %1193 = vst.msk [vmem:[%s226 + $0x78] sm:$0xff] %vm793, %v1177
      %s1194 = smul.u32 16, %s16
      %p1195 = scmp.lt.s32.totalorder %s1194, 31
      %s1196 = scalar_select %p1195, %s1194, 31
      %s1197 = smul.addr %s1196, 8
      %s1198 = scalar_lea.vmem %s5, %s1197
      // Predicated region
      $region41: #{mlp_forward.1} parent=39 // pred_check
        %p1199 = pneg %p144
      $region42: #{mlp_forward.1} parent=39 // pred_check_branch
        %1201 = sbr.rel (%p1199) target = $region44
      $region43: #{mlp_forward.1} parent=39 // pred_region
        %s1202 = smul.u32 16, %s16
      $region44: #{mlp_forward.1} parent=39 // pred_fallthru
        _
    $region40: #{mlp_forward.1} parent=5 // pred_fallthru
      _
    %p1203 = scmp.le.s32.totalorder 2, %s11
    // Predicated region
    $region45: #{mlp_forward.1} parent=5 // pred_check
      %p1204 = pneg %p1203
    $region46: #{mlp_forward.1} parent=5 // pred_check_branch
      %1206 = sbr.rel (%p1204) target = $region48
    $region47: #{mlp_forward.1} parent=5 // pred_region
      %s1207 = ssub.s32 %s11, 2
      // Predicated region
      $region49: #{mlp_forward.1} parent=47 // pred_check
        %p1208 = pneg %p150
      $region50: #{mlp_forward.1} parent=47 // pred_check_branch
        %1210 = sbr.rel (%p1208) target = $region52
      $region51: #{mlp_forward.1} parent=47 // pred_region
        %s1211 = smul.u32 16, %s17
        %p1212 = scmp.lt.s32.totalorder %s1211, 31
        %s1213 = scalar_select %p1212, %s1211, 31
        %s1214 = smul.addr %s1213, 8
        %s1215 = scalar_lea.vmem %s5, %s1214
      $region52: #{mlp_forward.1} parent=47 // pred_fallthru
        _
    $region48: #{mlp_forward.1} parent=5 // pred_fallthru
      _
  $region6: #{mlp_forward.1} parent=0 // loop_footer
    %s15 = sadd.s32 1, %s11
  $region7: #{mlp_forward.1} parent=0 // loop_footer_branch
    %10 = sbr.rel target = $region3
  $region8: #{mlp_forward.1} parent=0 // loop_exit
    _

</llo_original>
